<compile_context>
chip_gen: v7x
topology: tpu7x:2x2x1
jax: 0.10.0
libtpu: 0.0.40
codegen_flags: <defaults>
</compile_context>

<pallas_src>
import jax
import jax.numpy as jnp
from jax import lax
from jax.experimental import pallas as pl
from jax.experimental.pallas import tpu as pltpu


def critic_kernel(x_ref, w1_ref, b1_ref, w2_ref, b2_ref, w3_ref, b3_ref, o_ref):
    # Cast the streamed activation tile inside VMEM (zero extra HBM traffic).
    xt = x_ref[...].astype(w1_ref.dtype)

    # Layer 1 (feature-major): contract F between W1 (H, F) and x (tile_b, F)
    # -> (H, tile_b).  All intermediates are lane-dense (last dim = tile_b).
    h1 = lax.dot_general(w1_ref[...], xt,
                         dimension_numbers=(((1,), (1,)), ((), ())),
                         preferred_element_type=jnp.float32)
    h1 = jnp.maximum(h1 + b1_ref[...], 0.0)          # b1 (H, 1) broadcasts over lanes

    # Layer 2: W2 (H, H) @ h1 (H, tile_b) -> (H, tile_b).
    h2 = jnp.dot(w2_ref[...], h1.astype(w2_ref.dtype),
                 preferred_element_type=jnp.float32)
    h2 = jnp.maximum(h2 + b2_ref[...], 0.0)

    # Value head: (1, H) @ (H, tile_b) -> (1, tile_b), lane-dense output row.
    v = jnp.dot(w3_ref[...], h2.astype(w3_ref.dtype),
                preferred_element_type=jnp.float32)
    o_ref[...] = v + b3_ref[0, 0]                     # b3 scalar from SMEM


def _round_up(n, m):
    return ((n + m - 1) // m) * m


def critic_forward(x, w1, b1, w2, b2, w3, b3, *,
                   tile_b=4096, param_dtype=None, x_buffers=2):
    """Critic forward pass.

    x: (B, feature_size).  w_i are PyTorch-convention (out, in); b_i are (out,).
    param_dtype: optional MXU dtype for the weights (e.g. jnp.bfloat16 on
      v5e/v6e/v7x).  x is never copied/cast in HBM — the streamed tile is cast
      in-kernel; if x already arrives in bf16 upstream that is used directly.
      Note the bf16 path is a (documented) looser numeric contract than the
      f32 PyTorch module.
    x_buffers: pipeline depth for the streamed x operand (use 3 only if xprof
      shows exposed DMA on the x stream after enlarging tile_b).
    """
    B, F = x.shape
    H = w1.shape[0]

    # Weights stay in (out, in) layout for the feature-major kernel.
    b1r = b1.reshape(H, 1).astype(jnp.float32)
    b2r = b2.reshape(H, 1).astype(jnp.float32)
    w3r = w3.reshape(1, H)
    b3s = b3.reshape(1, 1).astype(jnp.float32)

    if param_dtype is not None:
        # Cast only the tiny weights host-side; never re-copy the x stream.
        w1 = w1.astype(param_dtype)
        w2 = w2.astype(param_dtype)
        w3r = w3r.astype(param_dtype)

    # Batch tile: multiple of 128 (lane-dense (1, tile_b) output rows and
    # (H, tile_b) intermediates), clamped for small batches.
    tile_b = max(128, min(_round_up(tile_b, 128), _round_up(max(B, 1), 128)))
    num_tiles = pl.cdiv(B, tile_b)

    # No full-array pad for ragged multi-tile batches: Pallas clips the partial
    # last x block; the garbage columns are independent and sliced off below.
    # Only the degenerate single-tile tiny-batch case pads (< one tile of rows).
    if num_tiles == 1 and B < tile_b:
        x = jnp.pad(x, ((0, tile_b - B), (0, 0)))

    x_itemsize = jnp.dtype(x.dtype).itemsize
    w_itemsize = jnp.dtype(w1.dtype).itemsize
    cost = pl.CostEstimate(           # advisory only (ignores lane padding)
        flops=2 * B * (F * H + H * H + H),
        transcendentals=0,
        bytes_accessed=(B * F * x_itemsize
                        + (F * H + H * H + H) * w_itemsize
                        + (2 * H + 1) * 4
                        + num_tiles * tile_b * 4),
    )

    resident = lambda i: (0, 0)       # weights/biases: same block every grid step
    if x_buffers is not None and x_buffers > 2:
        x_spec = pl.BlockSpec((tile_b, F), lambda i: (i, 0),
                              pipeline_mode=pl.Buffered(x_buffers))
    else:
        x_spec = pl.BlockSpec((tile_b, F), lambda i: (i, 0))

    out = pl.pallas_call(
        critic_kernel,
        out_shape=jax.ShapeDtypeStruct((1, num_tiles * tile_b), jnp.float32),
        grid=(num_tiles,),
        in_specs=[
            x_spec,                                     # x: streamed per batch tile
            pl.BlockSpec((H, F), resident),             # W1 (VMEM-resident)
            pl.BlockSpec((H, 1), resident),             # b1
            pl.BlockSpec((H, H), resident),             # W2
            pl.BlockSpec((H, 1), resident),             # b2
            pl.BlockSpec((1, H), resident),             # w3 row
            pl.BlockSpec(memory_space=pltpu.MemorySpace.SMEM),  # b3 scalar
        ],
        out_specs=pl.BlockSpec((1, tile_b), lambda i: (0, i)),  # lane-dense output row
        compiler_params=pltpu.CompilerParams(
            dimension_semantics=("parallel",),
            vmem_limit_bytes=32 * 1024 * 1024,
        ),
        cost_estimate=cost,
    )(x, w1, b1r, w2, b2r, w3r, b3s)

    # (1, num_tiles*tile_b) row == padded batch order; drop padding columns.
    return out[0, :B].reshape(B, 1)


def _init_linear(key, out_features, in_features):
    # Deterministic init mimicking PyTorch's default uniform(-1/sqrt(in), 1/sqrt(in)).
    kw, kb = jax.random.split(key)
    bound = 1.0 / jnp.sqrt(jnp.float32(in_features))
    w = jax.random.uniform(kw, (out_features, in_features), jnp.float32, -bound, bound)
    b = jax.random.uniform(kb, (out_features,), jnp.float32, -bound, bound)
    return w, b


if __name__ == "__main__":
    # Small shapes consistent with Critic(feature_size, x_static_size, hidden_size).
    feature_size = 16
    x_static_size = 16
    hidden_size = 32
    batch = 2
    in_features = feature_size + x_static_size  # Critic concatenates sizes in __init__

    key = jax.random.PRNGKey(0)
    k_in, k1, k2, k3, k_big = jax.random.split(key, 5)

    x = jax.random.normal(k_in, (batch, in_features), jnp.float32)
    w1, b1 = _init_linear(k1, hidden_size, in_features)
    w2, b2 = _init_linear(k2, hidden_size, hidden_size)
    w3, b3 = _init_linear(k3, 1, hidden_size)

    def ref_forward(xv):
        h = jnp.maximum(xv @ w1.T + b1, 0.0)
        h = jnp.maximum(h @ w2.T + b2, 0.0)
        return h @ w3.T + b3

    # 1) f32 path, tiny batch (single tile).
    out = jax.block_until_ready(critic_forward(x, w1, b1, w2, b2, w3, b3))
    assert out.shape == (batch, 1)
    assert jnp.allclose(out, ref_forward(x), atol=1e-5, rtol=1e-5)

    # 2) Multi-tile path with a ragged last tile (exercises the no-pad edge block).
    x_big = jax.random.normal(k_big, (300, in_features), jnp.float32)
    out_big = jax.block_until_ready(
        critic_forward(x_big, w1, b1, w2, b2, w3, b3, tile_b=128))
    assert out_big.shape == (300, 1)
    assert jnp.allclose(out_big, ref_forward(x_big), atol=1e-5, rtol=1e-5)

    # 3) bf16-weight path: x stays f32 in HBM; the streamed tile is cast in-kernel.
    out_bf16 = jax.block_until_ready(
        critic_forward(x, w1, b1, w2, b2, w3, b3, param_dtype=jnp.bfloat16))
    assert out_bf16.shape == (batch, 1)
    assert jnp.allclose(out_bf16, ref_forward(x), atol=5e-2, rtol=5e-2)

    print("KERNEL_OK")
</pallas_src>

<mosaic_0001>
module attributes {stable_mosaic.version = 11 : i64} {
  func.func @critic_kernel(%arg0: i32, %arg1: memref<128x32xf32, #tpu.memory_space<vmem>>, %arg2: memref<32x32xf32, #tpu.memory_space<vmem>>, %arg3: memref<32x1xf32, #tpu.memory_space<vmem>>, %arg4: memref<32x32xf32, #tpu.memory_space<vmem>>, %arg5: memref<32x1xf32, #tpu.memory_space<vmem>>, %arg6: memref<1x32xf32, #tpu.memory_space<vmem>>, %arg7: memref<1x1xf32, #tpu.memory_space<smem>>, %arg8: memref<1x128xf32, #tpu.memory_space<vmem>>) attributes {dimension_semantics = [#tpu.dimension_semantics<parallel>], iteration_bounds = array<i64: 1>, scalar_prefetch = 0 : i64, scratch_operands = 0 : i64, tpu.core_type = #tpu.core_type<tc>, window_params = [{transform_indices = @transform_0, window_bounds = array<i64: 128, 32>}, {pipeline_mode = #tpu.pipeline_mode<synchronous>, transform_indices = @transform_1, window_bounds = array<i64: 32, 32>}, {pipeline_mode = #tpu.pipeline_mode<synchronous>, transform_indices = @transform_2, window_bounds = array<i64: 32, 1>}, {pipeline_mode = #tpu.pipeline_mode<synchronous>, transform_indices = @transform_3, window_bounds = array<i64: 32, 32>}, {pipeline_mode = #tpu.pipeline_mode<synchronous>, transform_indices = @transform_4, window_bounds = array<i64: 32, 1>}, {pipeline_mode = #tpu.pipeline_mode<synchronous>, transform_indices = @transform_5, window_bounds = array<i64: 1, 32>}, {transform_indices = @transform_6, window_bounds = array<i64: 1, 1>}, {transform_indices = @transform_7, window_bounds = array<i64: 1, 128>}]} {
    %c0 = arith.constant 0 : index
    %c0_0 = arith.constant 0 : index
    %0 = vector.load %arg1[%c0, %c0_0] : memref<128x32xf32, #tpu.memory_space<vmem>>, vector<128x32xf32>
    %c0_1 = arith.constant 0 : index
    %c0_2 = arith.constant 0 : index
    %1 = vector.load %arg2[%c0_1, %c0_2] : memref<32x32xf32, #tpu.memory_space<vmem>>, vector<32x32xf32>
    %cst = arith.constant dense<0.000000e+00> : vector<32x128xf32>
    %2 = tpu.matmul %1, %0, %cst {dimension_numbers = #tpu.dot_dimension_numbers<[1], [1], [0], [0], [0, 0, 1, 0], [], []>} : vector<32x32xf32>, vector<128x32xf32>, vector<32x128xf32> -> vector<32x128xf32>
    %c0_3 = arith.constant 0 : index
    %c0_4 = arith.constant 0 : index
    %3 = vector.load %arg3[%c0_3, %c0_4] : memref<32x1xf32, #tpu.memory_space<vmem>>, vector<32x1xf32>
    %4 = vector.broadcast %3 : vector<32x1xf32> to vector<32x128xf32>
    %5 = arith.addf %2, %4 : vector<32x128xf32>
    %cst_5 = arith.constant 0.000000e+00 : f32
    %6 = vector.broadcast %cst_5 : f32 to vector<32x128xf32>
    %7 = arith.maximumf %5, %6 : vector<32x128xf32>
    %c0_6 = arith.constant 0 : index
    %c0_7 = arith.constant 0 : index
    %8 = vector.load %arg4[%c0_6, %c0_7] : memref<32x32xf32, #tpu.memory_space<vmem>>, vector<32x32xf32>
    %cst_8 = arith.constant dense<0.000000e+00> : vector<32x128xf32>
    %9 = tpu.matmul %8, %7, %cst_8 {dimension_numbers = #tpu.dot_dimension_numbers<[1], [0], [0], [1], [0, 0, 1, 1], [], []>} : vector<32x32xf32>, vector<32x128xf32>, vector<32x128xf32> -> vector<32x128xf32>
    %c0_9 = arith.constant 0 : index
    %c0_10 = arith.constant 0 : index
    %10 = vector.load %arg5[%c0_9, %c0_10] : memref<32x1xf32, #tpu.memory_space<vmem>>, vector<32x1xf32>
    %11 = vector.broadcast %10 : vector<32x1xf32> to vector<32x128xf32>
    %12 = arith.addf %9, %11 : vector<32x128xf32>
    %cst_11 = arith.constant 0.000000e+00 : f32
    %13 = vector.broadcast %cst_11 : f32 to vector<32x128xf32>
    %14 = arith.maximumf %12, %13 : vector<32x128xf32>
    %c0_12 = arith.constant 0 : index
    %c0_13 = arith.constant 0 : index
    %15 = vector.load %arg6[%c0_12, %c0_13] : memref<1x32xf32, #tpu.memory_space<vmem>>, vector<1x32xf32>
    %cst_14 = arith.constant dense<0.000000e+00> : vector<1x128xf32>
    %16 = tpu.matmul %15, %14, %cst_14 {dimension_numbers = #tpu.dot_dimension_numbers<[1], [0], [0], [1], [0, 0, 1, 1], [], []>} : vector<1x32xf32>, vector<32x128xf32>, vector<1x128xf32> -> vector<1x128xf32>
    %c0_15 = arith.constant 0 : index
    %c0_16 = arith.constant 0 : index
    %17 = memref.load %arg7[%c0_15, %c0_16] : memref<1x1xf32, #tpu.memory_space<smem>>
    %18 = vector.broadcast %17 : f32 to vector<1x128xf32>
    %19 = arith.addf %16, %18 : vector<1x128xf32>
    %c0_17 = arith.constant 0 : index
    %c0_18 = arith.constant 0 : index
    %20 = vector.load %arg8[%c0_17, %c0_18] : memref<1x128xf32, #tpu.memory_space<vmem>>, vector<1x128xf32>
    tpu.vector_store %arg8[%c0_17, %c0_18], %19 {strides = array<i32>} : memref<1x128xf32, #tpu.memory_space<vmem>>, vector<1x128xf32>,
    return
  }
  func.func @transform_0(%arg0: i32) -> (i32, i32) {
    %c0_i32 = arith.constant 0 : i32
    %c0_i32_0 = arith.constant 0 : i32
    return %arg0, %c0_i32 : i32, i32
  }
  func.func @transform_1(%arg0: i32) -> (i32, i32) {
    %c0_i32 = arith.constant 0 : i32
    %c0_i32_0 = arith.constant 0 : i32
    %c0_i32_1 = arith.constant 0 : i32
    return %c0_i32, %c0_i32_0 : i32, i32
  }
  func.func @transform_2(%arg0: i32) -> (i32, i32) {
    %c0_i32 = arith.constant 0 : i32
    %c0_i32_0 = arith.constant 0 : i32
    %c0_i32_1 = arith.constant 0 : i32
    return %c0_i32, %c0_i32_0 : i32, i32
  }
  func.func @transform_3(%arg0: i32) -> (i32, i32) {
    %c0_i32 = arith.constant 0 : i32
    %c0_i32_0 = arith.constant 0 : i32
    %c0_i32_1 = arith.constant 0 : i32
    return %c0_i32, %c0_i32_0 : i32, i32
  }
  func.func @transform_4(%arg0: i32) -> (i32, i32) {
    %c0_i32 = arith.constant 0 : i32
    %c0_i32_0 = arith.constant 0 : i32
    %c0_i32_1 = arith.constant 0 : i32
    return %c0_i32, %c0_i32_0 : i32, i32
  }
  func.func @transform_5(%arg0: i32) -> (i32, i32) {
    %c0_i32 = arith.constant 0 : i32
    %c0_i32_0 = arith.constant 0 : i32
    %c0_i32_1 = arith.constant 0 : i32
    return %c0_i32, %c0_i32_0 : i32, i32
  }
  func.func @transform_6(%arg0: i32) -> (i32, i32) {
    %c0_i32 = arith.constant 0 : i32
    %c0_i32_0 = arith.constant 0 : i32
    %c0_i32_1 = arith.constant 0 : i32
    return %c0_i32, %c0_i32_0 : i32, i32
  }
  func.func @transform_7(%arg0: i32) -> (i32, i32) {
    %c0_i32 = arith.constant 0 : i32
    %c0_i32_0 = arith.constant 0 : i32
    return %c0_i32, %arg0 : i32, i32
  }
}

</mosaic_0001>

<llo_original>
// kernel: tpu_custom_call.1
$region0: #{tpu_custom_call.1}
  #allocation0 [shape = 'u32[]', space=smem, size = 0x4, offset = 0x4, fixed_abs, tag = 'smem constant byte address 0x4 - core index']
  #allocation1 [shape = 'u32[144,128]{1,0:T(1,128)}', space=vmem, size = 0x12000, scoped, tag = 'internal scratch']
  #allocation2 [shape = 'f32[1,1]{1,0:T(1,128)S(6)}', space=smem, size = 0x200, scoped, tag = 'scoped memory for tpu_custom_call.1']
  %s0 = inlined_call_operand.vmem [shape: f32[128,32], index: 0, kind: input, shape index: {}]
  %s1 = inlined_call_operand.vmem [shape: f32[32,32], index: 1, kind: input, shape index: {}]
  %s2 = inlined_call_operand.vmem [shape: f32[32,1], index: 2, kind: input, shape index: {}]
  %s3 = inlined_call_operand.vmem [shape: f32[32,32], index: 3, kind: input, shape index: {}]
  %s4 = inlined_call_operand.vmem [shape: f32[32,1], index: 4, kind: input, shape index: {}]
  %s5 = inlined_call_operand.vmem [shape: f32[1,32], index: 5, kind: input, shape index: {}]
  %s6 = inlined_call_operand.<no memory space> [shape: f32[1,1], index: 6, kind: input, shape index: {}]
  %s7 = inlined_call_operand.hbm [shape: f32[1,128], index: 7, kind: output, shape index: {}]
  %s8 = sld [smem:[#allocation0]]
  $region38: #{tpu_custom_call.1} parent=0
    _
  %s10 = ssub.s32 1, %s8
  %s11 = scalar_select 0, %s10, %s8
  %12 = sst [smem:[#allocation2]] %s6
  $region1: #{tpu_custom_call.1} parent=0
    #allocation3 [shape = 'u8[512]{0}', space=vmem, size = 0x400, scoped, tag = 'output window, operand 0, single buffered']
    #allocation4 [shape = 's32[1]{0}', space=sflag, size = 0x4, scoped, tag = 'scoped memory for tpu_custom_call.1']
    %13 = vsyncpa [#allocation4], 0
    // Predicated region
    $region2: #{tpu_custom_call.1} parent=1 // pred_check
      _
    $region3: #{tpu_custom_call.1} parent=1 // pred_check_branch
      %15 = sbr.rel (0) target = $region5
    $region4: #{tpu_custom_call.1} parent=1 // pred_region
      _
    $region5: #{tpu_custom_call.1} parent=1 // pred_fallthru
      _
    // Predicated region
    $region6: #{tpu_custom_call.1} parent=1 // pred_check
      _
    $region7: #{tpu_custom_call.1} parent=1 // pred_check_branch
      %17 = sbr.rel (0) target = $region9
    $region8: #{tpu_custom_call.1} parent=1 // pred_region
      _
    $region9: #{tpu_custom_call.1} parent=1 // pred_fallthru
      _
    // Predicated region
    $region10: #{tpu_custom_call.1} parent=1 // pred_check
      _
    $region11: #{tpu_custom_call.1} parent=1 // pred_check_branch
      %19 = sbr.rel (0) target = $region13
    $region12: #{tpu_custom_call.1} parent=1 // pred_region
      _
    $region13: #{tpu_custom_call.1} parent=1 // pred_fallthru
      _
    // Predicated region
    $region14: #{tpu_custom_call.1} parent=1 // pred_check
      _
    $region15: #{tpu_custom_call.1} parent=1 // pred_check_branch
      %21 = sbr.rel (0) target = $region17
    $region16: #{tpu_custom_call.1} parent=1 // pred_region
      _
    $region17: #{tpu_custom_call.1} parent=1 // pred_fallthru
      _
    // Predicated region
    $region18: #{tpu_custom_call.1} parent=1 // pred_check
      _
    $region19: #{tpu_custom_call.1} parent=1 // pred_check_branch
      %23 = sbr.rel (0) target = $region21
    $region20: #{tpu_custom_call.1} parent=1 // pred_region
      _
    $region21: #{tpu_custom_call.1} parent=1 // pred_fallthru
      _
    // Predicated region
    $region22: #{tpu_custom_call.1} parent=1 // pred_check
      _
    $region23: #{tpu_custom_call.1} parent=1 // pred_check_branch
      %25 = sbr.rel (0) target = $region25
    $region24: #{tpu_custom_call.1} parent=1 // pred_region
      _
    $region25: #{tpu_custom_call.1} parent=1 // pred_fallthru
      _
    // Predicated region
    $region26: #{tpu_custom_call.1} parent=1 // pred_check
      _
    $region27: #{tpu_custom_call.1} parent=1 // pred_check_branch
      %27 = sbr.rel (0) target = $region29
    $region28: #{tpu_custom_call.1} parent=1 // pred_region
      _
    $region29: #{tpu_custom_call.1} parent=1 // pred_fallthru
      _
    %v28 = vld [vmem:[%s0] sm:$0xff]
    %v29 = vld [vmem:[%s0 + $0x8] sm:$0xff]
    %v30 = vld [vmem:[%s0 + $0x10] sm:$0xff]
    %v31 = vld [vmem:[%s0 + $0x18] sm:$0xff]
    %v32 = vld [vmem:[%s0 + $0x20] sm:$0xff]
    %v33 = vld [vmem:[%s0 + $0x28] sm:$0xff]
    %v34 = vld [vmem:[%s0 + $0x30] sm:$0xff]
    %v35 = vld [vmem:[%s0 + $0x38] sm:$0xff]
    %v36 = vld [vmem:[%s0 + $0x40] sm:$0xff]
    %v37 = vld [vmem:[%s0 + $0x48] sm:$0xff]
    %v38 = vld [vmem:[%s0 + $0x50] sm:$0xff]
    %v39 = vld [vmem:[%s0 + $0x58] sm:$0xff]
    %v40 = vld [vmem:[%s0 + $0x60] sm:$0xff]
    %v41 = vld [vmem:[%s0 + $0x68] sm:$0xff]
    %v42 = vld [vmem:[%s0 + $0x70] sm:$0xff]
    %v43 = vld [vmem:[%s0 + $0x78] sm:$0xff]
    %v44 = vld [vmem:[%s1] sm:$0xff]
    %v45 = vld [vmem:[%s1 + $0x8] sm:$0xff]
    %v46 = vld [vmem:[%s1 + $0x10] sm:$0xff]
    %v47 = vld [vmem:[%s1 + $0x18] sm:$0xff]
    %v48 = vld [vmem:[%s2] sm:$0xff]
    %v49 = vld [vmem:[%s2 + $0x8] sm:$0xff]
    %v50 = vld [vmem:[%s2 + $0x10] sm:$0xff]
    %v51 = vld [vmem:[%s2 + $0x18] sm:$0xff]
    %53 = vset.pattern.permute.xlu0 0
    %54 = vperm.xlu0 %53, %v48
    %v55 = vpop.permute.xlu0 %54
    %58 = vset.pattern.permute.xlu0 0
    %59 = vperm.xlu0 %58, %v49
    %v60 = vpop.permute.xlu0 %59
    %63 = vset.pattern.permute.xlu0 0
    %64 = vperm.xlu0 %63, %v50
    %v65 = vpop.permute.xlu0 %64
    %68 = vset.pattern.permute.xlu0 0
    %69 = vperm.xlu0 %68, %v51
    %v70 = vpop.permute.xlu0 %69
    %vm72 = vcmask 261120
    %v74 = vsel %vm72, %v44, 0
    %v77 = vsel %vm72, %v45, 0
    %v80 = vsel %vm72, %v46, 0
    %v83 = vsel %vm72, %v47, 0
    %v86 = vsel %vm72, %v28, 0
    %v89 = vsel %vm72, %v29, 0
    %v92 = vsel %vm72, %v30, 0
    %v95 = vsel %vm72, %v31, 0
    %v98 = vsel %vm72, %v32, 0
    %v101 = vsel %vm72, %v33, 0
    %v104 = vsel %vm72, %v34, 0
    %v107 = vsel %vm72, %v35, 0
    %v110 = vsel %vm72, %v36, 0
    %v113 = vsel %vm72, %v37, 0
    %v116 = vsel %vm72, %v38, 0
    %v119 = vsel %vm72, %v39, 0
    %v122 = vsel %vm72, %v40, 0
    %v125 = vsel %vm72, %v41, 0
    %v128 = vsel %vm72, %v42, 0
    %v131 = vsel %vm72, %v43, 0
    %133 = vmatprep.subr.mxu0 0.0
    %134 = vmatpush1.xpose.msra.mxu0 %v86
    %135 = vmatprep.subr.mxu0 0.0
    %136 = vmatpush1.xpose.msra.mxu0 %v89
    %137 = vmatprep.subr.mxu0 0.0
    %138 = vmatpush1.xpose.msra.mxu0 %v92
    %139 = vmatprep.subr.mxu0 0.0
    %140 = vmatpush1.xpose.msra.mxu0 %v95
    %141 = vmatprep.subr.mxu0 0.0
    %142 = vmatpush1.xpose.msra.mxu0 %v98
    %143 = vmatprep.subr.mxu0 0.0
    %144 = vmatpush1.xpose.msra.mxu0 %v101
    %145 = vmatprep.subr.mxu0 0.0
    %146 = vmatpush1.xpose.msra.mxu0 %v104
    %147 = vmatprep.subr.mxu0 0.0
    %148 = vmatpush1.xpose.msra.mxu0 %v107
    %149 = vmatprep.subr.mxu0 0.0
    %150 = vmatpush1.xpose.msra.mxu0 %v110
    %151 = vmatprep.subr.mxu0 0.0
    %152 = vmatpush1.xpose.msra.mxu0 %v113
    %153 = vmatprep.subr.mxu0 0.0
    %154 = vmatpush1.xpose.msra.mxu0 %v116
    %155 = vmatprep.subr.mxu0 0.0
    %156 = vmatpush1.xpose.msra.mxu0 %v119
    %157 = vmatprep.subr.mxu0 0.0
    %158 = vmatpush1.xpose.msra.mxu0 %v122
    %159 = vmatprep.subr.mxu0 0.0
    %160 = vmatpush1.xpose.msra.mxu0 %v125
    %161 = vmatprep.subr.mxu0 0.0
    %162 = vmatpush1.xpose.msra.mxu0 %v128
    %163 = vmatprep.subr.mxu0 0.0
    %164 = vmatpush1.xpose.msra.mxu0 %v131
    %165 = vmatprep.subr.mxu0 0.0
    %166 = vmatpush1.xpose.msra.mxu0 0.0
    %167 = vmatprep.subr.mxu0 0.0
    %168 = vmatpush1.xpose.msra.mxu0 0.0
    %169 = vmatprep.subr.mxu0 0.0
    %170 = vmatpush1.xpose.msra.mxu0 0.0
    %171 = vmatprep.subr.mxu0 0.0
    %172 = vmatpush1.xpose.msra.mxu0 0.0
    %173 = vmatprep.subr.mxu0 0.0
    %174 = vmatpush1.xpose.msra.mxu0 0.0
    %175 = vmatprep.subr.mxu0 0.0
    %176 = vmatpush1.xpose.msra.mxu0 0.0
    %177 = vmatprep.subr.mxu0 0.0
    %178 = vmatpush1.xpose.msra.mxu0 0.0
    %179 = vmatprep.subr.mxu0 0.0
    %180 = vmatpush1.xpose.msra.mxu0 0.0
    %181 = vmatprep.subr.mxu0 0.0
    %182 = vmatpush1.xpose.msra.mxu0 0.0
    %183 = vmatprep.subr.mxu0 0.0
    %184 = vmatpush1.xpose.msra.mxu0 0.0
    %185 = vmatprep.subr.mxu0 0.0
    %186 = vmatpush1.xpose.msra.mxu0 0.0
    %187 = vmatprep.subr.mxu0 0.0
    %188 = vmatpush1.xpose.msra.mxu0 0.0
    %189 = vmatprep.subr.mxu0 0.0
    %190 = vmatpush1.xpose.msra.mxu0 0.0
    %191 = vmatprep.subr.mxu0 0.0
    %192 = vmatpush1.xpose.msra.mxu0 0.0
    %193 = vmatprep.subr.mxu0 0.0
    %194 = vmatpush1.xpose.msra.mxu0 0.0
    %195 = vmatprep.subr.mxu0 0.0
    %196 = vmatpush1.xpose.msra.mxu0 0.0
    %197 = vmatprep.mubr.f32.mxu0 0.0
    %198 = vmatmul.mubr.f32.gmra.mrb[0].mxu0 %v74
    %v199 = vpop.f32.mrb[0].mxu0
    %v200 = vadd.f32 %v55, %v199
    %v201 = vpop.f32.mrb[0].mxu0
    %202 = vmatprep.mubr.f32.mxu0 0.0
    %203 = vmatmul.mubr.f32.gmra.mrb[0].mxu0 %v77
    %v204 = vpop.f32.mrb[0].mxu0
    %v205 = vadd.f32 %v60, %v204
    %v206 = vpop.f32.mrb[0].mxu0
    %207 = vmatprep.mubr.f32.mxu0 0.0
    %208 = vmatmul.mubr.f32.gmra.mrb[0].mxu0 %v80
    %v209 = vpop.f32.mrb[0].mxu0
    %v210 = vadd.f32 %v65, %v209
    %v211 = vpop.f32.mrb[0].mxu0
    %212 = vmatprep.mubr.f32.mxu0 0.0
    %213 = vmatmul.mubr.f32.gmra.mrb[0].mxu0 %v83
    %v214 = vpop.f32.mrb[0].mxu0
    %v215 = vadd.f32 %v70, %v214
    %v216 = vpop.f32.mrb[0].mxu0
    %217 = vdwg.mxu0
    %v218 = vmax.f32 %v200, 0.0
    %v219 = vmax.f32 %v205, 0.0
    %v220 = vmax.f32 %v210, 0.0
    %v221 = vmax.f32 %v215, 0.0
    %v222 = vld [vmem:[%s3] sm:$0xff]
    %v223 = vld [vmem:[%s3 + $0x8] sm:$0xff]
    %v224 = vld [vmem:[%s3 + $0x10] sm:$0xff]
    %v225 = vld [vmem:[%s3 + $0x18] sm:$0xff]
    %v226 = vld [vmem:[%s4] sm:$0xff]
    %v227 = vld [vmem:[%s4 + $0x8] sm:$0xff]
    %v228 = vld [vmem:[%s4 + $0x10] sm:$0xff]
    %v229 = vld [vmem:[%s4 + $0x18] sm:$0xff]
    %231 = vset.pattern.permute.xlu0 0
    %232 = vperm.xlu0 %231, %v226
    %v233 = vpop.permute.xlu0 %232
    %236 = vset.pattern.permute.xlu0 0
    %237 = vperm.xlu0 %236, %v227
    %v238 = vpop.permute.xlu0 %237
    %241 = vset.pattern.permute.xlu0 0
    %242 = vperm.xlu0 %241, %v228
    %v243 = vpop.permute.xlu0 %242
    %246 = vset.pattern.permute.xlu0 0
    %247 = vperm.xlu0 %246, %v229
    %v248 = vpop.permute.xlu0 %247
    %v251 = vsel %vm72, %v222, 0
    %v254 = vsel %vm72, %v223, 0
    %v257 = vsel %vm72, %v224, 0
    %v260 = vsel %vm72, %v225, 0
    %262 = vmatprep.subr.mxu0 0.0
    %263 = vmatpush1.msra.mxu0 %v218
    %264 = vmatprep.subr.mxu0 0.0
    %265 = vmatpush1.msra.mxu0 %v219
    %266 = vmatprep.subr.mxu0 0.0
    %267 = vmatpush1.msra.mxu0 %v220
    %268 = vmatprep.subr.mxu0 0.0
    %269 = vmatpush1.msra.mxu0 %v221
    %270 = vmatprep.subr.mxu0 0.0
    %271 = vmatpush1.msra.mxu0 0.0
    %272 = vmatprep.subr.mxu0 0.0
    %273 = vmatpush1.msra.mxu0 0.0
    %274 = vmatprep.subr.mxu0 0.0
    %275 = vmatpush1.msra.mxu0 0.0
    %276 = vmatprep.subr.mxu0 0.0
    %277 = vmatpush1.msra.mxu0 0.0
    %278 = vmatprep.subr.mxu0 0.0
    %279 = vmatpush1.msra.mxu0 0.0
    %280 = vmatprep.subr.mxu0 0.0
    %281 = vmatpush1.msra.mxu0 0.0
    %282 = vmatprep.subr.mxu0 0.0
    %283 = vmatpush1.msra.mxu0 0.0
    %284 = vmatprep.subr.mxu0 0.0
    %285 = vmatpush1.msra.mxu0 0.0
    %286 = vmatprep.subr.mxu0 0.0
    %287 = vmatpush1.msra.mxu0 0.0
    %288 = vmatprep.subr.mxu0 0.0
    %289 = vmatpush1.msra.mxu0 0.0
    %290 = vmatprep.subr.mxu0 0.0
    %291 = vmatpush1.msra.mxu0 0.0
    %292 = vmatprep.subr.mxu0 0.0
    %293 = vmatpush1.msra.mxu0 0.0
    %294 = vmatprep.subr.mxu0 0.0
    %295 = vmatpush1.msra.mxu0 0.0
    %296 = vmatprep.subr.mxu0 0.0
    %297 = vmatpush1.msra.mxu0 0.0
    %298 = vmatprep.subr.mxu0 0.0
    %299 = vmatpush1.msra.mxu0 0.0
    %300 = vmatprep.subr.mxu0 0.0
    %301 = vmatpush1.msra.mxu0 0.0
    %302 = vmatprep.subr.mxu0 0.0
    %303 = vmatpush1.msra.mxu0 0.0
    %304 = vmatprep.subr.mxu0 0.0
    %305 = vmatpush1.msra.mxu0 0.0
    %306 = vmatprep.subr.mxu0 0.0
    %307 = vmatpush1.msra.mxu0 0.0
    %308 = vmatprep.subr.mxu0 0.0
    %309 = vmatpush1.msra.mxu0 0.0
    %310 = vmatprep.subr.mxu0 0.0
    %311 = vmatpush1.msra.mxu0 0.0
    %312 = vmatprep.subr.mxu0 0.0
    %313 = vmatpush1.msra.mxu0 0.0
    %314 = vmatprep.subr.mxu0 0.0
    %315 = vmatpush1.msra.mxu0 0.0
    %316 = vmatprep.subr.mxu0 0.0
    %317 = vmatpush1.msra.mxu0 0.0
    %318 = vmatprep.subr.mxu0 0.0
    %319 = vmatpush1.msra.mxu0 0.0
    %320 = vmatprep.subr.mxu0 0.0
    %321 = vmatpush1.msra.mxu0 0.0
    %322 = vmatprep.subr.mxu0 0.0
    %323 = vmatpush1.msra.mxu0 0.0
    %324 = vmatprep.subr.mxu0 0.0
    %325 = vmatpush1.msra.mxu0 0.0
    %326 = vmatprep.mubr.f32.mxu0 0.0
    %327 = vmatmul.mubr.f32.gmra.mrb[0].mxu0 %v251
    %v328 = vpop.f32.mrb[0].mxu0
    %v329 = vadd.f32 %v233, %v328
    %v330 = vpop.f32.mrb[0].mxu0
    %331 = vmatprep.mubr.f32.mxu0 0.0
    %332 = vmatmul.mubr.f32.gmra.mrb[0].mxu0 %v254
    %v333 = vpop.f32.mrb[0].mxu0
    %v334 = vadd.f32 %v238, %v333
    %v335 = vpop.f32.mrb[0].mxu0
    %336 = vmatprep.mubr.f32.mxu0 0.0
    %337 = vmatmul.mubr.f32.gmra.mrb[0].mxu0 %v257
    %v338 = vpop.f32.mrb[0].mxu0
    %v339 = vadd.f32 %v243, %v338
    %v340 = vpop.f32.mrb[0].mxu0
    %341 = vmatprep.mubr.f32.mxu0 0.0
    %342 = vmatmul.mubr.f32.gmra.mrb[0].mxu0 %v260
    %v343 = vpop.f32.mrb[0].mxu0
    %v344 = vadd.f32 %v248, %v343
    %v345 = vpop.f32.mrb[0].mxu0
    %346 = vdwg.mxu0
    %v347 = vmax.f32 %v329, 0.0
    %v348 = vmax.f32 %v334, 0.0
    %v349 = vmax.f32 %v339, 0.0
    %v350 = vmax.f32 %v344, 0.0
    %v351 = vld [vmem:[%s5] sm:$0x1]
    %s352 = sld [smem:[#allocation2]]
    %v353 = vstv %s352
    %v355 = vsel %vm72, %v351, 0
    %357 = vmatprep.subr.mxu0 0.0
    %358 = vmatpush1.msra.mxu0 %v347
    %359 = vmatprep.subr.mxu0 0.0
    %360 = vmatpush1.msra.mxu0 %v348
    %361 = vmatprep.subr.mxu0 0.0
    %362 = vmatpush1.msra.mxu0 %v349
    %363 = vmatprep.subr.mxu0 0.0
    %364 = vmatpush1.msra.mxu0 %v350
    %365 = vmatprep.subr.mxu0 0.0
    %366 = vmatpush1.msra.mxu0 0.0
    %367 = vmatprep.subr.mxu0 0.0
    %368 = vmatpush1.msra.mxu0 0.0
    %369 = vmatprep.subr.mxu0 0.0
    %370 = vmatpush1.msra.mxu0 0.0
    %371 = vmatprep.subr.mxu0 0.0
    %372 = vmatpush1.msra.mxu0 0.0
    %373 = vmatprep.subr.mxu0 0.0
    %374 = vmatpush1.msra.mxu0 0.0
    %375 = vmatprep.subr.mxu0 0.0
    %376 = vmatpush1.msra.mxu0 0.0
    %377 = vmatprep.subr.mxu0 0.0
    %378 = vmatpush1.msra.mxu0 0.0
    %379 = vmatprep.subr.mxu0 0.0
    %380 = vmatpush1.msra.mxu0 0.0
    %381 = vmatprep.subr.mxu0 0.0
    %382 = vmatpush1.msra.mxu0 0.0
    %383 = vmatprep.subr.mxu0 0.0
    %384 = vmatpush1.msra.mxu0 0.0
    %385 = vmatprep.subr.mxu0 0.0
    %386 = vmatpush1.msra.mxu0 0.0
    %387 = vmatprep.subr.mxu0 0.0
    %388 = vmatpush1.msra.mxu0 0.0
    %389 = vmatprep.subr.mxu0 0.0
    %390 = vmatpush1.msra.mxu0 0.0
    %391 = vmatprep.subr.mxu0 0.0
    %392 = vmatpush1.msra.mxu0 0.0
    %393 = vmatprep.subr.mxu0 0.0
    %394 = vmatpush1.msra.mxu0 0.0
    %395 = vmatprep.subr.mxu0 0.0
    %396 = vmatpush1.msra.mxu0 0.0
    %397 = vmatprep.subr.mxu0 0.0
    %398 = vmatpush1.msra.mxu0 0.0
    %399 = vmatprep.subr.mxu0 0.0
    %400 = vmatpush1.msra.mxu0 0.0
    %401 = vmatprep.subr.mxu0 0.0
    %402 = vmatpush1.msra.mxu0 0.0
    %403 = vmatprep.subr.mxu0 0.0
    %404 = vmatpush1.msra.mxu0 0.0
    %405 = vmatprep.subr.mxu0 0.0
    %406 = vmatpush1.msra.mxu0 0.0
    %407 = vmatprep.subr.mxu0 0.0
    %408 = vmatpush1.msra.mxu0 0.0
    %409 = vmatprep.subr.mxu0 0.0
    %410 = vmatpush1.msra.mxu0 0.0
    %411 = vmatprep.subr.mxu0 0.0
    %412 = vmatpush1.msra.mxu0 0.0
    %413 = vmatprep.subr.mxu0 0.0
    %414 = vmatpush1.msra.mxu0 0.0
    %415 = vmatprep.subr.mxu0 0.0
    %416 = vmatpush1.msra.mxu0 0.0
    %417 = vmatprep.subr.mxu0 0.0
    %418 = vmatpush1.msra.mxu0 0.0
    %419 = vmatprep.subr.mxu0 0.0
    %420 = vmatpush1.msra.mxu0 0.0
    %421 = vmatprep.mubr.f32.mxu0 0.0
    %422 = vmatmul.mubr.f32.gmra.mrb[0].mxu0 %v355
    %v423 = vpop.f32.mrb[0].mxu0
    %v424 = vadd.f32 %v353, %v423
    %v425 = vpop.f32.mrb[0].mxu0
    %426 = vdwg.mxu0
    %427 = vst [vmem:[#allocation3] sm:$0x1] %v424
    // Predicated region
    $region30: #{tpu_custom_call.1} parent=1 // pred_check
      _
    $region31: #{tpu_custom_call.1} parent=1 // pred_check_branch
      %429 = sbr.rel (0) target = $region33
    $region32: #{tpu_custom_call.1} parent=1 // pred_region
      %s431 = ssub.s32 16, 16
      %432 = vsyncadd [#allocation4], %s431
      %s434 = sshll.u32 [#allocation3], 4
      %s435 = int_to_ptr.vmem [resolvable:$true] %s434
      %437 = dma.vmem_to_hbm [thread:$0]  %s435, 16, %s7, [#allocation4]
    $region33: #{tpu_custom_call.1} parent=1 // pred_fallthru
      _
    // Predicated region
    $region34: #{tpu_custom_call.1} parent=1 // pred_check
      _
    $region35: #{tpu_custom_call.1} parent=1 // pred_check_branch
      %439 = sbr.rel (0) target = $region37
    $region36: #{tpu_custom_call.1} parent=1 // pred_region
      %440 = dma.done [#allocation4], 16
    $region37: #{tpu_custom_call.1} parent=1 // pred_fallthru
      _
    %441 = vsyncpa [#allocation4], 1

</llo_original>
